<compile_context>
chip_gen: v7x
topology: tpu7x:2x2x1
jax: 0.10.0
libtpu: 0.0.40
codegen_flags: <defaults>
</compile_context>

<pallas_src>
import functools

import jax
import jax.numpy as jnp
from jax.experimental import pallas as pl
from jax.experimental.pallas import tpu as pltpu

PENALTY_WEIGHT = 0.5  # deterministic "constructor" argument


def _loss_kernel(x_ref, t_ref, *rest, valid_rows, pack, mask_rows):
    if pack > 1:
        seg_ref, out_ref = rest
    else:
        seg_ref, out_ref = None, rest[0]

    tile_m, width = x_ref.shape
    x = x_ref[...].astype(jnp.float32)
    t = t_ref[...].astype(jnp.float32)

    if mask_rows:
        row0 = pl.program_id(0) * tile_m
        row_ids = jax.lax.broadcasted_iota(jnp.int32, (tile_m, 1), 0) + row0
        valid = row_ids < valid_rows                            # (tile_m, 1) bool

    # BCE in clamp-x BCEWithLogits form (f32-equivalent to nn.BCELoss's
    # post-log -100 clamps):  bce = max(xc,0) - xc*t + log(1 + exp(-|xc|)).
    xc = jnp.clip(x, -100.0, 100.0)
    e = jnp.exp(-jnp.abs(xc))                                   # exp(-|x|) in (0, 1]
    lg = jnp.log(1.0 + e)
    bce = jnp.maximum(xc, 0.0) - xc * t + lg
    if mask_rows:
        bce = jnp.where(valid, bce, 0.0)
    bce_sum = jnp.sum(jnp.sum(bce, axis=1, keepdims=True), axis=0, keepdims=True)

    # Penalty sigmoid reusing e.  Exact reciprocal: pl.reciprocal(approx=True)
    # would perturb the 16-element row sums beyond the 1e-5 tolerance.
    inv = 1.0 / (1.0 + e)
    p = jnp.where(xc >= 0.0, inv, e * inv)

    if pack > 1:
        # Segment-sum over the `pack` original rows packed along the lane axis,
        # as a tiny MXU matmul against a constant 0/1 (width, pack) matrix.
        seg = jnp.dot(p, seg_ref[...], preferred_element_type=jnp.float32)
    else:
        seg = jnp.sum(p, axis=1, keepdims=True)                 # (tile_m, 1)

    pen = jnp.abs(seg - 1.0)
    if mask_rows:
        pen = jnp.where(valid, pen, 0.0)
    pen_sum = jnp.sum(jnp.sum(pen, axis=1, keepdims=True), axis=0, keepdims=True)

    # Per-tile partial sums: lane 0 = bce_sum, lane 1 = pen_sum (lane-dense store).
    lane = jax.lax.broadcasted_iota(jnp.int32, (1, 1, 128), 2)
    out_ref[...] = jnp.where(lane == 0, bce_sum,
                             jnp.where(lane == 1, pen_sum, 0.0))


def loss_with_one_class_penalty(outputs, targets,
                                penalty_weight=PENALTY_WEIGHT, *, tile_rows=None):
    """outputs, targets: (..., num_classes), f32 or bf16. Returns scalar f32."""
    assert outputs.shape == targets.shape
    num_classes = outputs.shape[-1]
    x = outputs.reshape(-1, num_classes)
    t = targets.reshape(-1, num_classes)
    batch = x.shape[0]

    # Lane-dense packing: put `pack` original rows side by side on the 128-lane
    # axis.  pack = largest divisor of batch that is <= 128 // num_classes, so
    # the reshape below is a free bitcast (no padding pass / extra HBM traffic).
    pack = 1
    for cand in range(min(128 // max(num_classes, 1), batch), 1, -1):
        if batch % cand == 0:
            pack = cand
            break
    width = pack * num_classes
    packed_rows = batch // pack
    x = x.reshape(packed_rows, width)
    t = t.reshape(packed_rows, width)

    # Block sizing: ~2 MiB per input block, sized by dtype itemsize, rows a
    # multiple of 8 (16 for sub-4-byte dtypes), capped at 8192 rows.
    itemsize = x.dtype.itemsize
    row_align = 16 if itemsize < 4 else 8
    if tile_rows is not None:
        tile_m = max(1, int(tile_rows))
        if tile_m < packed_rows:
            tile_m = max(row_align, tile_m - tile_m % row_align)
        tile_m = min(tile_m, packed_rows)
    elif packed_rows < 2 * row_align:
        tile_m = packed_rows                      # one full-array block
    else:
        cap = (2 << 20) // (itemsize * width)
        cap = max(row_align, min(8192, cap))
        cap -= cap % row_align
        # >= 2 evenly sized tiles so both v7x TensorCores are fed on the
        # "parallel" grid axis.
        n = max(2, pl.cdiv(packed_rows, cap))
        tile_m = pl.cdiv(pl.cdiv(packed_rows, n), row_align) * row_align
        tile_m = min(tile_m, packed_rows)
    num_tiles = pl.cdiv(packed_rows, tile_m)
    mask_rows = (num_tiles * tile_m) != packed_rows

    kernel = functools.partial(_loss_kernel, valid_rows=packed_rows,
                               pack=pack, mask_rows=mask_rows)

    in_specs = [pl.BlockSpec((tile_m, width), lambda i: (i, 0)),
                pl.BlockSpec((tile_m, width), lambda i: (i, 0))]
    args = [x, t]
    if pack > 1:
        # Constant segment-sum matrix: lane j belongs to packed row j // C.
        seg_mat = (jnp.arange(width, dtype=jnp.int32)[:, None] // num_classes
                   == jnp.arange(pack, dtype=jnp.int32)[None, :]).astype(jnp.float32)
        in_specs.append(pl.BlockSpec((width, pack), lambda i: (0, 0)))  # DMA'd once
        args.append(seg_mat)

    partials = pl.pallas_call(
        kernel,
        out_shape=jax.ShapeDtypeStruct((num_tiles, 1, 128), jnp.float32),
        grid=(num_tiles,),
        in_specs=in_specs,
        out_specs=pl.BlockSpec((1, 1, 128), lambda i: (i, 0, 0)),
        compiler_params=pltpu.CompilerParams(dimension_semantics=("parallel",)),
    )(*args)

    # Tiny final reduction + weighting on the JAX side (divide by the original
    # element / row counts).
    bce_total = jnp.sum(partials[:, 0, 0])
    pen_total = jnp.sum(partials[:, 0, 1])
    base_loss = bce_total / (batch * num_classes)
    penalty_loss = pen_total / batch
    return base_loss + penalty_weight * penalty_loss


def _reference(outputs, targets, penalty_weight=PENALTY_WEIGHT):
    p = jax.nn.sigmoid(outputs.astype(jnp.float32))
    t = targets.astype(jnp.float32)
    log_p = jnp.maximum(jnp.log(p), -100.0)
    log_1mp = jnp.maximum(jnp.log(1.0 - p), -100.0)
    base = jnp.mean(-(t * log_p + (1.0 - t) * log_1mp))
    penalty = jnp.mean(jnp.abs(jnp.sum(p, axis=-1) - 1.0))
    return base + penalty_weight * penalty


if __name__ == "__main__":
    keys = jax.random.split(jax.random.PRNGKey(0), 10)

    def check(o, t, tol=1e-5, **kw):
        got = jax.block_until_ready(loss_with_one_class_penalty(o, t, **kw))
        want = _reference(o, t)
        assert jnp.allclose(got, want, atol=tol, rtol=tol), (got, want)

    # Primary: batch=8, C=16 -> pack=8, one 128-lane packed row, single block.
    check(jax.random.normal(keys[0], (8, 16), jnp.float32),
          jax.random.uniform(keys[1], (8, 16), jnp.float32))

    # Ragged batch (37 has no divisor <= 8): pack=1 fallback, 2 tiles, masked tail.
    check(jax.random.normal(keys[2], (37, 16), jnp.float32),
          jax.random.uniform(keys[3], (37, 16), jnp.float32))

    # Multi-tile + ragged last tile with lane packing (forced small tile).
    check(jax.random.normal(keys[4], (200, 16), jnp.float32),
          jax.random.uniform(keys[5], (200, 16), jnp.float32), tile_rows=8)

    # bf16 inputs: dtype-aware tiling (16-row alignment), two even tiles.
    check(jax.random.normal(keys[6], (256, 16), jnp.bfloat16),
          jax.random.uniform(keys[7], (256, 16), jnp.bfloat16), tol=3e-5)

    # Non-power-of-two class count (C=24 -> pack=5, width=120) + leading batch dims.
    check(jax.random.normal(keys[8], (2, 10, 24), jnp.float32),
          jax.random.uniform(keys[9], (2, 10, 24), jnp.float32))

    print("KERNEL_OK")
</pallas_src>

<mosaic_0001>
module attributes {stable_mosaic.version = 11 : i64} {
  func.func @_loss_kernel(%arg0: i32, %arg1: memref<1x128xf32, #tpu.memory_space<vmem>>, %arg2: memref<1x128xf32, #tpu.memory_space<vmem>>, %arg3: memref<128x8xf32, #tpu.memory_space<vmem>>, %arg4: memref<1x1x128xf32, #tpu.memory_space<vmem>>) attributes {dimension_semantics = [#tpu.dimension_semantics<parallel>], iteration_bounds = array<i64: 1>, scalar_prefetch = 0 : i64, scratch_operands = 0 : i64, tpu.core_type = #tpu.core_type<tc>, window_params = [{transform_indices = @transform_0, window_bounds = array<i64: 1, 128>}, {transform_indices = @transform_1, window_bounds = array<i64: 1, 128>}, {pipeline_mode = #tpu.pipeline_mode<synchronous>, transform_indices = @transform_2, window_bounds = array<i64: 128, 8>}, {transform_indices = @transform_3, window_bounds = array<i64: 1, 1, 128>}]} {
    %c0 = arith.constant 0 : index
    %c0_0 = arith.constant 0 : index
    %0 = vector.load %arg1[%c0, %c0_0] : memref<1x128xf32, #tpu.memory_space<vmem>>, vector<1x128xf32>
    %c0_1 = arith.constant 0 : index
    %c0_2 = arith.constant 0 : index
    %1 = vector.load %arg2[%c0_1, %c0_2] : memref<1x128xf32, #tpu.memory_space<vmem>>, vector<1x128xf32>
    %cst = arith.constant -1.000000e+02 : f32
    %cst_3 = arith.constant 1.000000e+02 : f32
    %2 = vector.broadcast %cst : f32 to vector<1x128xf32>
    %3 = arith.maximumf %2, %0 : vector<1x128xf32>
    %4 = vector.broadcast %cst_3 : f32 to vector<1x128xf32>
    %5 = arith.minimumf %4, %3 : vector<1x128xf32>
    %6 = math.absf %5 : vector<1x128xf32>
    %cst_4 = arith.constant 0.000000e+00 : f32
    %7 = vector.broadcast %cst_4 : f32 to vector<1x128xf32>
    %8 = arith.subf %7, %6 : vector<1x128xf32>
    %9 = math.exp %8 : vector<1x128xf32>
    %cst_5 = arith.constant 1.000000e+00 : f32
    %10 = vector.broadcast %cst_5 : f32 to vector<1x128xf32>
    %11 = arith.addf %10, %9 : vector<1x128xf32>
    %12 = math.log %11 : vector<1x128xf32>
    %cst_6 = arith.constant 0.000000e+00 : f32
    %13 = vector.broadcast %cst_6 : f32 to vector<1x128xf32>
    %14 = arith.maximumf %5, %13 : vector<1x128xf32>
    %15 = arith.mulf %5, %1 : vector<1x128xf32>
    %16 = arith.subf %14, %15 : vector<1x128xf32>
    %17 = arith.addf %16, %12 : vector<1x128xf32>
    %cst_7 = arith.constant dense<0.000000e+00> : vector<1xf32>
    %18 = vector.multi_reduction <add>, %17, %cst_7 [1] : vector<1x128xf32> to vector<1xf32>
    %19 = vector.shape_cast %18 : vector<1xf32> to vector<1x1xf32>
    %cst_8 = arith.constant dense<0.000000e+00> : vector<1xf32>
    %20 = vector.multi_reduction <add>, %19, %cst_8 [0] : vector<1x1xf32> to vector<1xf32>
    %21 = vector.shape_cast %20 : vector<1xf32> to vector<1x1xf32>
    %cst_9 = arith.constant 1.000000e+00 : f32
    %22 = vector.broadcast %cst_9 : f32 to vector<1x128xf32>
    %23 = arith.addf %22, %9 : vector<1x128xf32>
    %cst_10 = arith.constant 1.000000e+00 : f32
    %24 = vector.broadcast %cst_10 : f32 to vector<1x128xf32>
    %25 = arith.divf %24, %23 : vector<1x128xf32>
    %cst_11 = arith.constant 0.000000e+00 : f32
    %26 = vector.broadcast %cst_11 : f32 to vector<1x128xf32>
    %27 = arith.cmpf oge, %5, %26 : vector<1x128xf32>
    %28 = arith.mulf %9, %25 : vector<1x128xf32>
    %29 = arith.select %27, %25, %28 : vector<1x128xi1>, vector<1x128xf32>
    %c0_12 = arith.constant 0 : index
    %c0_13 = arith.constant 0 : index
    %30 = vector.load %arg3[%c0_12, %c0_13] : memref<128x8xf32, #tpu.memory_space<vmem>>, vector<128x8xf32>
    %cst_14 = arith.constant dense<0.000000e+00> : vector<1x8xf32>
    %31 = tpu.matmul %29, %30, %cst_14 {dimension_numbers = #tpu.dot_dimension_numbers<[1], [0], [0], [1], [0, 0, 1, 1], [], []>} : vector<1x128xf32>, vector<128x8xf32>, vector<1x8xf32> -> vector<1x8xf32>
    %cst_15 = arith.constant 1.000000e+00 : f32
    %32 = vector.broadcast %cst_15 : f32 to vector<1x8xf32>
    %33 = arith.subf %31, %32 : vector<1x8xf32>
    %34 = math.absf %33 : vector<1x8xf32>
    %cst_16 = arith.constant dense<0.000000e+00> : vector<1xf32>
    %35 = vector.multi_reduction <add>, %34, %cst_16 [1] : vector<1x8xf32> to vector<1xf32>
    %36 = vector.shape_cast %35 : vector<1xf32> to vector<1x1xf32>
    %cst_17 = arith.constant dense<0.000000e+00> : vector<1xf32>
    %37 = vector.multi_reduction <add>, %36, %cst_17 [0] : vector<1x1xf32> to vector<1xf32>
    %38 = vector.shape_cast %37 : vector<1xf32> to vector<1x1xf32>
    %39 = tpu.iota {dimensions = array<i32: 2>} : vector<1x1x128xi32>
    %c0_i32 = arith.constant 0 : i32
    %40 = vector.broadcast %c0_i32 : i32 to vector<1x1x128xi32>
    %41 = arith.cmpi eq, %39, %40 : vector<1x1x128xi32>
    %c1_i32 = arith.constant 1 : i32
    %42 = vector.broadcast %c1_i32 : i32 to vector<1x1x128xi32>
    %43 = arith.cmpi eq, %39, %42 : vector<1x1x128xi32>
    %cst_18 = arith.constant 0.000000e+00 : f32
    %44 = vector.shape_cast %38 : vector<1x1xf32> to vector<1x1x1xf32>
    %45 = vector.broadcast %44 : vector<1x1x1xf32> to vector<1x1x128xf32>
    %46 = vector.broadcast %cst_18 : f32 to vector<1x1x128xf32>
    %47 = arith.select %43, %45, %46 : vector<1x1x128xi1>, vector<1x1x128xf32>
    %48 = vector.shape_cast %21 : vector<1x1xf32> to vector<1x1x1xf32>
    %49 = vector.broadcast %48 : vector<1x1x1xf32> to vector<1x1x128xf32>
    %50 = arith.select %41, %49, %47 : vector<1x1x128xi1>, vector<1x1x128xf32>
    %c0_19 = arith.constant 0 : index
    %c0_20 = arith.constant 0 : index
    %c0_21 = arith.constant 0 : index
    %51 = vector.load %arg4[%c0_19, %c0_20, %c0_21] : memref<1x1x128xf32, #tpu.memory_space<vmem>>, vector<1x1x128xf32>
    tpu.vector_store %arg4[%c0_19, %c0_20, %c0_21], %50 {strides = array<i32>} : memref<1x1x128xf32, #tpu.memory_space<vmem>>, vector<1x1x128xf32>,
    return
  }
  func.func @transform_0(%arg0: i32) -> (i32, i32) {
    %c0_i32 = arith.constant 0 : i32
    %c0_i32_0 = arith.constant 0 : i32
    return %arg0, %c0_i32 : i32, i32
  }
  func.func @transform_1(%arg0: i32) -> (i32, i32) {
    %c0_i32 = arith.constant 0 : i32
    %c0_i32_0 = arith.constant 0 : i32
    return %arg0, %c0_i32 : i32, i32
  }
  func.func @transform_2(%arg0: i32) -> (i32, i32) {
    %c0_i32 = arith.constant 0 : i32
    %c0_i32_0 = arith.constant 0 : i32
    %c0_i32_1 = arith.constant 0 : i32
    return %c0_i32, %c0_i32_0 : i32, i32
  }
  func.func @transform_3(%arg0: i32) -> (i32, i32, i32) {
    %c0_i32 = arith.constant 0 : i32
    %c0_i32_0 = arith.constant 0 : i32
    %c0_i32_1 = arith.constant 0 : i32
    return %arg0, %c0_i32, %c0_i32_0 : i32, i32, i32
  }
}

</mosaic_0001>

<llo_original>
// kernel: tpu_custom_call.1
$region0: #{tpu_custom_call.1}
  #allocation0 [shape = 'u32[]', space=smem, size = 0x4, offset = 0x4, fixed_abs, tag = 'smem constant byte address 0x4 - core index']
  #allocation1 [shape = 'u32[144,128]{1,0:T(1,128)}', space=vmem, size = 0x12000, scoped, tag = 'internal scratch']
  %s0 = inlined_call_operand.vmem [shape: f32[1,128], index: 0, kind: input, shape index: {}]
  %s1 = inlined_call_operand.vmem [shape: f32[1,128], index: 1, kind: input, shape index: {}]
  %s2 = inlined_call_operand.vmem [shape: f32[128,8], index: 2, kind: input, shape index: {}]
  %s3 = inlined_call_operand.hbm [shape: f32[1,1,128], index: 3, kind: output, shape index: {}]
  %s4 = sld [smem:[#allocation0]]
  $region22: #{tpu_custom_call.1} parent=0
    _
  %s6 = ssub.s32 1, %s4
  %s7 = scalar_select 0, %s6, %s4
  $region1: #{tpu_custom_call.1} parent=0
    #allocation2 [shape = 'u8[512]{0}', space=vmem, size = 0x400, scoped, tag = 'output window, operand 0, single buffered']
    #allocation3 [shape = 's32[1]{0}', space=sflag, size = 0x4, scoped, tag = 'scoped memory for tpu_custom_call.1']
    %8 = vsyncpa [#allocation3], 0
    // Predicated region
    $region2: #{tpu_custom_call.1} parent=1 // pred_check
      _
    $region3: #{tpu_custom_call.1} parent=1 // pred_check_branch
      %10 = sbr.rel (0) target = $region5
    $region4: #{tpu_custom_call.1} parent=1 // pred_region
      _
    $region5: #{tpu_custom_call.1} parent=1 // pred_fallthru
      _
    // Predicated region
    $region6: #{tpu_custom_call.1} parent=1 // pred_check
      _
    $region7: #{tpu_custom_call.1} parent=1 // pred_check_branch
      %12 = sbr.rel (0) target = $region9
    $region8: #{tpu_custom_call.1} parent=1 // pred_region
      _
    $region9: #{tpu_custom_call.1} parent=1 // pred_fallthru
      _
    // Predicated region
    $region10: #{tpu_custom_call.1} parent=1 // pred_check
      _
    $region11: #{tpu_custom_call.1} parent=1 // pred_check_branch
      %14 = sbr.rel (0) target = $region13
    $region12: #{tpu_custom_call.1} parent=1 // pred_region
      _
    $region13: #{tpu_custom_call.1} parent=1 // pred_fallthru
      _
    %v15 = vld [vmem:[%s0] sm:$0x1]
    %v16 = vld [vmem:[%s1] sm:$0x1]
    %v17 = vmax.f32 %v15, -100.0
    %v18 = vmin.f32 %v17, 100.0
    %v19 = vand.u32 2147483647, %v18
    %v20 = vsub.f32 0.0, %v19
    %v21 = vmul.f32 %v20, 1.442695
    %v22 = vpow.pop %v21
    %v23 = vadd.f32 %v22, 1.0
    %v24 = vlog2.pop %v23
    %v25 = vmul.f32 %v24, 0.6931472
    %v26 = vmax.f32 %v18, 0.0
    %v27 = vmul.f32 %v18, %v16
    %v28 = vsub.f32 %v26, %v27
    %v29 = vadd.f32 %v28, %v25
    %vm30 = vcmask 1040384
    %v31 = vsel %vm30, %v29, 0.0
    %32 = vadd.xlane.f32.xlu0 %v31
    %v33 = vpop.xlane.xlu0 %32
    %v34 = vadd.f32 %v33, 0.0
    %v35 = vrcp.pop %v23
    %v36 = vmul.f32 1.0, %v35
    %vm37 = vcmp.ge.f32.partialorder %v18, 0.0
    %v38 = vmul.f32 %v22, %v36
    %v39 = vsel %vm37, %v36, %v38
    %v40 = vld [vmem:[%s2] sm:$0xff]
    %v41 = vld [vmem:[%s2 + $0x8] sm:$0xff]
    %v42 = vld [vmem:[%s2 + $0x10] sm:$0xff]
    %v43 = vld [vmem:[%s2 + $0x18] sm:$0xff]
    %v44 = vld [vmem:[%s2 + $0x20] sm:$0xff]
    %v45 = vld [vmem:[%s2 + $0x28] sm:$0xff]
    %v46 = vld [vmem:[%s2 + $0x30] sm:$0xff]
    %v47 = vld [vmem:[%s2 + $0x38] sm:$0xff]
    %v48 = vld [vmem:[%s2 + $0x40] sm:$0xff]
    %v49 = vld [vmem:[%s2 + $0x48] sm:$0xff]
    %v50 = vld [vmem:[%s2 + $0x50] sm:$0xff]
    %v51 = vld [vmem:[%s2 + $0x58] sm:$0xff]
    %v52 = vld [vmem:[%s2 + $0x60] sm:$0xff]
    %v53 = vld [vmem:[%s2 + $0x68] sm:$0xff]
    %v54 = vld [vmem:[%s2 + $0x70] sm:$0xff]
    %v55 = vld [vmem:[%s2 + $0x78] sm:$0xff]
    %56 = vmatprep.subr.mxu0 0.0
    %57 = vmatpush1.msra.mxu0 %v40
    %58 = vmatprep.subr.mxu0 0.0
    %59 = vmatpush1.msra.mxu0 %v41
    %60 = vmatprep.subr.mxu0 0.0
    %61 = vmatpush1.msra.mxu0 %v42
    %62 = vmatprep.subr.mxu0 0.0
    %63 = vmatpush1.msra.mxu0 %v43
    %64 = vmatprep.subr.mxu0 0.0
    %65 = vmatpush1.msra.mxu0 %v44
    %66 = vmatprep.subr.mxu0 0.0
    %67 = vmatpush1.msra.mxu0 %v45
    %68 = vmatprep.subr.mxu0 0.0
    %69 = vmatpush1.msra.mxu0 %v46
    %70 = vmatprep.subr.mxu0 0.0
    %71 = vmatpush1.msra.mxu0 %v47
    %72 = vmatprep.subr.mxu0 0.0
    %73 = vmatpush1.msra.mxu0 %v48
    %74 = vmatprep.subr.mxu0 0.0
    %75 = vmatpush1.msra.mxu0 %v49
    %76 = vmatprep.subr.mxu0 0.0
    %77 = vmatpush1.msra.mxu0 %v50
    %78 = vmatprep.subr.mxu0 0.0
    %79 = vmatpush1.msra.mxu0 %v51
    %80 = vmatprep.subr.mxu0 0.0
    %81 = vmatpush1.msra.mxu0 %v52
    %82 = vmatprep.subr.mxu0 0.0
    %83 = vmatpush1.msra.mxu0 %v53
    %84 = vmatprep.subr.mxu0 0.0
    %85 = vmatpush1.msra.mxu0 %v54
    %86 = vmatprep.subr.mxu0 0.0
    %87 = vmatpush1.msra.mxu0 %v55
    %88 = vmatprep.subr.mxu0 0.0
    %89 = vmatpush1.msra.mxu0 0.0
    %90 = vmatprep.subr.mxu0 0.0
    %91 = vmatpush1.msra.mxu0 0.0
    %92 = vmatprep.subr.mxu0 0.0
    %93 = vmatpush1.msra.mxu0 0.0
    %94 = vmatprep.subr.mxu0 0.0
    %95 = vmatpush1.msra.mxu0 0.0
    %96 = vmatprep.subr.mxu0 0.0
    %97 = vmatpush1.msra.mxu0 0.0
    %98 = vmatprep.subr.mxu0 0.0
    %99 = vmatpush1.msra.mxu0 0.0
    %100 = vmatprep.subr.mxu0 0.0
    %101 = vmatpush1.msra.mxu0 0.0
    %102 = vmatprep.subr.mxu0 0.0
    %103 = vmatpush1.msra.mxu0 0.0
    %104 = vmatprep.subr.mxu0 0.0
    %105 = vmatpush1.msra.mxu0 0.0
    %106 = vmatprep.subr.mxu0 0.0
    %107 = vmatpush1.msra.mxu0 0.0
    %108 = vmatprep.subr.mxu0 0.0
    %109 = vmatpush1.msra.mxu0 0.0
    %110 = vmatprep.subr.mxu0 0.0
    %111 = vmatpush1.msra.mxu0 0.0
    %112 = vmatprep.subr.mxu0 0.0
    %113 = vmatpush1.msra.mxu0 0.0
    %114 = vmatprep.subr.mxu0 0.0
    %115 = vmatpush1.msra.mxu0 0.0
    %116 = vmatprep.subr.mxu0 0.0
    %117 = vmatpush1.msra.mxu0 0.0
    %118 = vmatprep.subr.mxu0 0.0
    %119 = vmatpush1.msra.mxu0 0.0
    %120 = vmatprep.mubr.f32.mxu0 0.0
    %121 = vmatmul.mubr.f32.gmra.mrb[0].mxu0 %v39
    %v122 = vpop.f32.mrb[0].mxu0
    %v123 = vadd.f32 0.0, %v122
    %v124 = vpop.f32.mrb[0].mxu0
    %125 = vdwg.mxu0
    %v126 = vsub.f32 %v123, 1.0
    %v127 = vand.u32 2147483647, %v126
    %vm128 = vcmask 57344
    %v129 = vsel %vm128, %v127, 0.0
    %130 = vadd.xlane.f32.xlu0 %v129
    %v131 = vpop.xlane.xlu0 %130
    %v132 = vadd.f32 %v131, 0.0
    %v133 = vlaneseq
    %v134 = vand.u32 %v133, 127
    %vm135 = vcmp.eq.s32.totalorder %v134, 0
    %vm136 = vcmp.eq.s32.totalorder %v134, 1
    %v137 = vsel %vm136, %v132, 0.0
    %v138 = vsel %vm135, %v34, %v137
    %139 = vst [vmem:[#allocation2] sm:$0x1] %v138
    // Predicated region
    $region14: #{tpu_custom_call.1} parent=1 // pred_check
      _
    $region15: #{tpu_custom_call.1} parent=1 // pred_check_branch
      %141 = sbr.rel (0) target = $region17
    $region16: #{tpu_custom_call.1} parent=1 // pred_region
      %s143 = ssub.s32 16, 16
      %144 = vsyncadd [#allocation3], %s143
      %s146 = sshll.u32 [#allocation2], 4
      %s147 = int_to_ptr.vmem [resolvable:$true] %s146
      %149 = dma.vmem_to_hbm [thread:$0]  %s147, 16, %s3, [#allocation3]
    $region17: #{tpu_custom_call.1} parent=1 // pred_fallthru
      _
    // Predicated region
    $region18: #{tpu_custom_call.1} parent=1 // pred_check
      _
    $region19: #{tpu_custom_call.1} parent=1 // pred_check_branch
      %151 = sbr.rel (0) target = $region21
    $region20: #{tpu_custom_call.1} parent=1 // pred_region
      %152 = dma.done [#allocation3], 16
    $region21: #{tpu_custom_call.1} parent=1 // pred_fallthru
      _
    %153 = vsyncpa [#allocation3], 1

</llo_original>
